<compile_context>
chip_gen: v5e
topology: v5e:2x2
jax: 0.10.0
libtpu: 0.0.40
codegen_flags: <defaults>
</compile_context>

<pallas_src>
import functools

import jax
import jax.numpy as jnp
from jax.experimental import pallas as pl
from jax.experimental.pallas import tpu as pltpu


def _round_up(x: int, m: int) -> int:
    return (x + m - 1) // m * m


def _decoder_kernel(x_ref, b1_ref, w1x_ref, w2_ref, b2_ref,
                    w3t_ref, b3t_ref, out_ref, *, y_dim: int):
    # ---- layer 1 on the VPU: h = relu(x @ W1[:x_dim] + b1')  (K = x_dim) ----
    x = x_ref[...]                                   # [tile, x_dim] f32
    x_dim = x.shape[1]
    acc = x[:, 0:1] * w1x_ref[0:1, :]                # [tile,1] * [1,hid]
    for k in range(1, x_dim):                        # static unroll, x_dim small
        acc = acc + x[:, k:k + 1] * w1x_ref[k:k + 1, :]
    h = jnp.maximum(acc + b1_ref[...], 0.0)          # [tile, hid] f32

    # ---- layer 2 on the MXU: h = relu(h @ W2 + b2) --------------------------
    h2 = jnp.dot(h.astype(w2_ref.dtype), w2_ref[...],
                 preferred_element_type=jnp.float32) + b2_ref[...]
    h2 = jnp.maximum(h2, 0.0)                        # [tile, hid] f32

    # ---- fused head, lane-dense output: stats^T = W3^T @ h2^T ---------------
    # lhs [2*y_dim, hid] contracts dim 1 with rhs [tile, hid] dim 1
    # -> [2*y_dim, tile]  (lanes = target rows, fully dense stores)
    stats_t = jax.lax.dot_general(
        w3t_ref[...], h2.astype(w3t_ref.dtype),
        dimension_numbers=(((1,), (1,)), ((), ())),
        preferred_element_type=jnp.float32)
    stats_t = stats_t + b3t_ref[...]                 # [2*y_dim,1] bcast over lanes

    # rows [0, y_dim) = mu (identity); rows [y_dim, 2*y_dim) = sigma =
    # 1e-4 + softplus(log_sigma), stable form (exp/log1p run on the EUP).
    sp = jnp.maximum(stats_t, 0.0) + jnp.log1p(jnp.exp(-jnp.abs(stats_t)))
    row = jax.lax.broadcasted_iota(jnp.int32, stats_t.shape, 0)
    out = jnp.where(row < y_dim, stats_t, 1e-4 + sp)
    out_ref[...] = out.astype(out_ref.dtype)


def decoder_forward(z, x_tgt, params, *, max_tile_rows=512,
                    mxu_dtype=jnp.float32):
    """
    z      : [z_dim]            (single meta-task latent; matches the module)
    x_tgt  : [N_tgt, x_dim]
    returns (mu, sigma) each [N_tgt, y_dim]
    """
    assert z.ndim == 1, "only z.ndim == 1 supported (matches PyTorch module)"
    w1, b1, w2, b2, w3, b3 = params
    n_tgt, x_dim = x_tgt.shape
    hid = w1.shape[1]
    y_dim = w3.shape[1] // 2
    out_rows = 2 * y_dim

    # --- wrapper-side (tiny, static-shaped) parameter massaging --------------
    w1x = w1[:x_dim].astype(jnp.float32)                        # [x_dim, hid]
    w1z = w1[x_dim:].astype(jnp.float32)                        # [z_dim, hid]
    b1_eff = (z[None, :].astype(jnp.float32) @ w1z
              + b1.astype(jnp.float32))                         # [1, hid]
    # fused, transposed head: rows [0,y_dim) = mu, rows [y_dim,2y) = log_sigma
    w3t = w3.astype(jnp.float32).T                              # [2*y_dim, hid]
    b3t = b3.astype(jnp.float32).reshape(1, out_rows).T         # [2*y_dim, 1]
    w2f = w2.astype(jnp.float32)
    b2f = b2.astype(jnp.float32).reshape(1, hid)

    # MXU operand dtype (bf16 path keeps accumulation / elementwise in f32)
    w2_m = w2f.astype(mxu_dtype)
    w3t_m = w3t.astype(mxu_dtype)

    # --- row tiling (sublane axis multiple of 8) ------------------------------
    # Small N collapses to a single grid step; large N uses 512-row tiles.
    # NOTE: padded rows produce garbage (nonzero b1'); they are sliced off
    # below and must never be reduced over in-kernel.
    tile = min(max_tile_rows, _round_up(n_tgt, 8))
    n_pad = _round_up(n_tgt, tile)
    x = x_tgt.astype(jnp.float32)
    if n_pad != n_tgt:
        x = jnp.pad(x, ((0, n_pad - n_tgt), (0, 0)))
    grid = (n_pad // tile,)

    row_spec = pl.BlockSpec((tile, x_dim), lambda i: (i, 0))
    out_spec = pl.BlockSpec((out_rows, tile), lambda i: (0, i))   # lane-dense

    def const(shape):  # weights/biases stay resident across the row grid
        return pl.BlockSpec(shape, lambda i: (0, 0))

    flops = 2 * n_pad * (x_dim * hid + hid * hid + hid * out_rows)
    bytes_accessed = 4 * (n_pad * x_dim                       # x_tgt
                          + hid + hid * hid + hid             # b1', W2, b2
                          + out_rows * hid + out_rows         # head W/b
                          + n_pad * out_rows)                 # fused output

    kernel = functools.partial(_decoder_kernel, y_dim=y_dim)

    stats_t = pl.pallas_call(
        kernel,
        out_shape=jax.ShapeDtypeStruct((out_rows, n_pad), jnp.float32),
        grid=grid,
        in_specs=[
            row_spec,                   # x rows
            const((1, hid)),            # b1'  (z folded in)
            const((x_dim, hid)),        # W1[:x_dim]
            const((hid, hid)),          # W2   (MXU dtype)
            const((1, hid)),            # b2
            const((out_rows, hid)),     # W3^T (mu rows then log_sigma rows)
            const((out_rows, 1)),       # b3^T
        ],
        out_specs=out_spec,
        compiler_params=pltpu.CompilerParams(
            dimension_semantics=("parallel",)),
        cost_estimate=pl.CostEstimate(
            flops=flops,
            transcendentals=2 * out_rows * n_pad,
            bytes_accessed=bytes_accessed),
    )(x, b1_eff, w1x, w2_m, b2f, w3t_m, b3t)

    stats_t = stats_t[:, :n_tgt]                # drop padded target rows
    mu = stats_t[:y_dim].T                      # [N_tgt, y_dim]
    sigma = stats_t[y_dim:].T                   # [N_tgt, y_dim]
    return mu, sigma


def init_params(key, x_dim, z_dim, y_dim, hid_dim):
    """Deterministic parameter init (mimics nn.Linear shapes).
    Weights stored as [in, out] so the math is x @ W + b."""
    in_dim = x_dim + z_dim
    k = jax.random.split(key, 6)

    def lin(kw, kb, fan_in, fan_out):
        bound = 1.0 / jnp.sqrt(fan_in)
        w = jax.random.uniform(kw, (fan_in, fan_out), jnp.float32, -bound, bound)
        b = jax.random.uniform(kb, (1, fan_out), jnp.float32, -bound, bound)
        return w, b

    w1, b1 = lin(k[0], k[1], in_dim, hid_dim)
    w2, b2 = lin(k[2], k[3], hid_dim, hid_dim)
    w3, b3 = lin(k[4], k[5], hid_dim, 2 * y_dim)
    return (w1, b1, w2, b2, w3, b3)


def decoder_reference(z, x_tgt, params):
    """Pure-JAX reference (mirrors the PyTorch module exactly)."""
    w1, b1, w2, b2, w3, b3 = params
    n_tgt = x_tgt.shape[0]
    z_exp = jnp.broadcast_to(z[None, :], (n_tgt, z.shape[0]))
    xz = jnp.concatenate([x_tgt, z_exp], axis=-1)
    h = jnp.maximum(xz @ w1 + b1, 0.0)
    h = jnp.maximum(h @ w2 + b2, 0.0)
    stats = h @ w3 + b3
    y_dim = w3.shape[1] // 2
    mu, log_sigma = stats[:, :y_dim], stats[:, y_dim:]
    sigma = 1e-4 + jax.nn.softplus(log_sigma)
    return mu, sigma


if __name__ == "__main__":
    x_dim, z_dim, y_dim, hid_dim = 4, 8, 1, 128   # hid_dim matches module default
    n_tgt = 200                                   # exercises row padding

    key = jax.random.PRNGKey(0)
    k_param, k_x, k_z = jax.random.split(key, 3)

    params = init_params(k_param, x_dim, z_dim, y_dim, hid_dim)
    x_tgt = jax.random.normal(k_x, (n_tgt, x_dim), jnp.float32)
    z = jax.random.normal(k_z, (z_dim,), jnp.float32)

    mu_ref, sigma_ref = decoder_reference(z, x_tgt, params)

    # f32 MXU path (default) — strict tolerance against the reference.
    mu, sigma = decoder_forward(z, x_tgt, params)
    mu, sigma = jax.block_until_ready((mu, sigma))
    assert mu.shape == (n_tgt, y_dim) and sigma.shape == (n_tgt, y_dim)
    assert jnp.allclose(mu, mu_ref, atol=1e-4, rtol=1e-5)
    assert jnp.allclose(sigma, sigma_ref, atol=1e-4, rtol=1e-5)
    assert bool(jnp.all(sigma > 0.0))

    # bf16 MXU-operand path (v6e/v7x peak lever) — f32 accumulation/elementwise,
    # so only matmul-operand rounding differs; loose tolerance.
    mu_b, sigma_b = decoder_forward(z, x_tgt, params, mxu_dtype=jnp.bfloat16)
    mu_b, sigma_b = jax.block_until_ready((mu_b, sigma_b))
    assert jnp.allclose(mu_b, mu_ref, atol=5e-2, rtol=5e-2)
    assert jnp.allclose(sigma_b, sigma_ref, atol=5e-2, rtol=5e-2)
    assert bool(jnp.all(sigma_b > 0.0))

    print("KERNEL_OK")
</pallas_src>

<mosaic_0001>
module attributes {stable_mosaic.version = 11 : i64} {
  func.func @_decoder_kernel(%arg0: i32, %arg1: memref<200x4xf32, #tpu.memory_space<vmem>>, %arg2: memref<1x128xf32, #tpu.memory_space<vmem>>, %arg3: memref<4x128xf32, #tpu.memory_space<vmem>>, %arg4: memref<128x128xf32, #tpu.memory_space<vmem>>, %arg5: memref<1x128xf32, #tpu.memory_space<vmem>>, %arg6: memref<2x128xf32, #tpu.memory_space<vmem>>, %arg7: memref<2x1xf32, #tpu.memory_space<vmem>>, %arg8: memref<2x200xf32, #tpu.memory_space<vmem>>) attributes {dimension_semantics = [#tpu.dimension_semantics<parallel>], iteration_bounds = array<i64: 1>, scalar_prefetch = 0 : i64, scratch_operands = 0 : i64, tpu.core_type = #tpu.core_type<tc>, window_params = [{transform_indices = @transform_0, window_bounds = array<i64: 200, 4>}, {pipeline_mode = #tpu.pipeline_mode<synchronous>, transform_indices = @transform_1, window_bounds = array<i64: 1, 128>}, {pipeline_mode = #tpu.pipeline_mode<synchronous>, transform_indices = @transform_2, window_bounds = array<i64: 4, 128>}, {pipeline_mode = #tpu.pipeline_mode<synchronous>, transform_indices = @transform_3, window_bounds = array<i64: 128, 128>}, {pipeline_mode = #tpu.pipeline_mode<synchronous>, transform_indices = @transform_4, window_bounds = array<i64: 1, 128>}, {pipeline_mode = #tpu.pipeline_mode<synchronous>, transform_indices = @transform_5, window_bounds = array<i64: 2, 128>}, {pipeline_mode = #tpu.pipeline_mode<synchronous>, transform_indices = @transform_6, window_bounds = array<i64: 2, 1>}, {transform_indices = @transform_7, window_bounds = array<i64: 2, 200>}]} {
    %c0 = arith.constant 0 : index
    %c0_0 = arith.constant 0 : index
    %0 = vector.load %arg1[%c0, %c0_0] : memref<200x4xf32, #tpu.memory_space<vmem>>, vector<200x4xf32>
    %1 = vector.extract_strided_slice %0 {offsets = [0, 0], sizes = [200, 1], strides = [1, 1]} : vector<200x4xf32> to vector<200x1xf32>
    %c0_1 = arith.constant 0 : index
    %c0_2 = arith.constant 0 : index
    %2 = vector.load %arg3[%c0_1, %c0_2] : memref<4x128xf32, #tpu.memory_space<vmem>>, vector<1x128xf32>
    %3 = vector.broadcast %1 : vector<200x1xf32> to vector<200x128xf32>
    %4 = vector.broadcast %2 : vector<1x128xf32> to vector<200x128xf32>
    %5 = arith.mulf %3, %4 : vector<200x128xf32>
    %6 = vector.extract_strided_slice %0 {offsets = [0, 1], sizes = [200, 1], strides = [1, 1]} : vector<200x4xf32> to vector<200x1xf32>
    %c1 = arith.constant 1 : index
    %c0_3 = arith.constant 0 : index
    %7 = vector.load %arg3[%c1, %c0_3] : memref<4x128xf32, #tpu.memory_space<vmem>>, vector<1x128xf32>
    %8 = vector.broadcast %6 : vector<200x1xf32> to vector<200x128xf32>
    %9 = vector.broadcast %7 : vector<1x128xf32> to vector<200x128xf32>
    %10 = arith.mulf %8, %9 : vector<200x128xf32>
    %11 = arith.addf %5, %10 : vector<200x128xf32>
    %12 = vector.extract_strided_slice %0 {offsets = [0, 2], sizes = [200, 1], strides = [1, 1]} : vector<200x4xf32> to vector<200x1xf32>
    %c2 = arith.constant 2 : index
    %c0_4 = arith.constant 0 : index
    %13 = vector.load %arg3[%c2, %c0_4] : memref<4x128xf32, #tpu.memory_space<vmem>>, vector<1x128xf32>
    %14 = vector.broadcast %12 : vector<200x1xf32> to vector<200x128xf32>
    %15 = vector.broadcast %13 : vector<1x128xf32> to vector<200x128xf32>
    %16 = arith.mulf %14, %15 : vector<200x128xf32>
    %17 = arith.addf %11, %16 : vector<200x128xf32>
    %18 = vector.extract_strided_slice %0 {offsets = [0, 3], sizes = [200, 1], strides = [1, 1]} : vector<200x4xf32> to vector<200x1xf32>
    %c3 = arith.constant 3 : index
    %c0_5 = arith.constant 0 : index
    %19 = vector.load %arg3[%c3, %c0_5] : memref<4x128xf32, #tpu.memory_space<vmem>>, vector<1x128xf32>
    %20 = vector.broadcast %18 : vector<200x1xf32> to vector<200x128xf32>
    %21 = vector.broadcast %19 : vector<1x128xf32> to vector<200x128xf32>
    %22 = arith.mulf %20, %21 : vector<200x128xf32>
    %23 = arith.addf %17, %22 : vector<200x128xf32>
    %c0_6 = arith.constant 0 : index
    %c0_7 = arith.constant 0 : index
    %24 = vector.load %arg2[%c0_6, %c0_7] : memref<1x128xf32, #tpu.memory_space<vmem>>, vector<1x128xf32>
    %25 = vector.broadcast %24 : vector<1x128xf32> to vector<200x128xf32>
    %26 = arith.addf %23, %25 : vector<200x128xf32>
    %cst = arith.constant 0.000000e+00 : f32
    %27 = vector.broadcast %cst : f32 to vector<200x128xf32>
    %28 = arith.maximumf %26, %27 : vector<200x128xf32>
    %c0_8 = arith.constant 0 : index
    %c0_9 = arith.constant 0 : index
    %29 = vector.load %arg4[%c0_8, %c0_9] : memref<128x128xf32, #tpu.memory_space<vmem>>, vector<128x128xf32>
    %cst_10 = arith.constant dense<0.000000e+00> : vector<200x128xf32>
    %30 = tpu.matmul %28, %29, %cst_10 {dimension_numbers = #tpu.dot_dimension_numbers<[1], [0], [0], [1], [0, 0, 1, 1], [], []>} : vector<200x128xf32>, vector<128x128xf32>, vector<200x128xf32> -> vector<200x128xf32>
    %c0_11 = arith.constant 0 : index
    %c0_12 = arith.constant 0 : index
    %31 = vector.load %arg5[%c0_11, %c0_12] : memref<1x128xf32, #tpu.memory_space<vmem>>, vector<1x128xf32>
    %32 = vector.broadcast %31 : vector<1x128xf32> to vector<200x128xf32>
    %33 = arith.addf %30, %32 : vector<200x128xf32>
    %cst_13 = arith.constant 0.000000e+00 : f32
    %34 = vector.broadcast %cst_13 : f32 to vector<200x128xf32>
    %35 = arith.maximumf %33, %34 : vector<200x128xf32>
    %c0_14 = arith.constant 0 : index
    %c0_15 = arith.constant 0 : index
    %36 = vector.load %arg6[%c0_14, %c0_15] : memref<2x128xf32, #tpu.memory_space<vmem>>, vector<2x128xf32>
    %cst_16 = arith.constant dense<0.000000e+00> : vector<2x200xf32>
    %37 = tpu.matmul %36, %35, %cst_16 {dimension_numbers = #tpu.dot_dimension_numbers<[1], [1], [0], [0], [0, 0, 1, 0], [], []>} : vector<2x128xf32>, vector<200x128xf32>, vector<2x200xf32> -> vector<2x200xf32>
    %c0_17 = arith.constant 0 : index
    %c0_18 = arith.constant 0 : index
    %38 = vector.load %arg7[%c0_17, %c0_18] : memref<2x1xf32, #tpu.memory_space<vmem>>, vector<2x1xf32>
    %39 = vector.broadcast %38 : vector<2x1xf32> to vector<2x200xf32>
    %40 = arith.addf %37, %39 : vector<2x200xf32>
    %cst_19 = arith.constant 0.000000e+00 : f32
    %41 = vector.broadcast %cst_19 : f32 to vector<2x200xf32>
    %42 = arith.maximumf %40, %41 : vector<2x200xf32>
    %43 = math.absf %40 : vector<2x200xf32>
    %cst_20 = arith.constant 0.000000e+00 : f32
    %44 = vector.broadcast %cst_20 : f32 to vector<2x200xf32>
    %45 = arith.subf %44, %43 : vector<2x200xf32>
    %46 = math.exp %45 : vector<2x200xf32>
    %47 = math.log1p %46 : vector<2x200xf32>
    %48 = arith.addf %42, %47 : vector<2x200xf32>
    %49 = tpu.iota {dimensions = array<i32: 0>} : vector<2x200xi32>
    %c1_i32 = arith.constant 1 : i32
    %50 = vector.broadcast %c1_i32 : i32 to vector<2x200xi32>
    %51 = arith.cmpi slt, %49, %50 : vector<2x200xi32>
    %cst_21 = arith.constant 9.99999974E-5 : f32
    %52 = vector.broadcast %cst_21 : f32 to vector<2x200xf32>
    %53 = arith.addf %52, %48 : vector<2x200xf32>
    %54 = arith.select %51, %40, %53 : vector<2x200xi1>, vector<2x200xf32>
    %c0_22 = arith.constant 0 : index
    %c0_23 = arith.constant 0 : index
    %55 = vector.load %arg8[%c0_22, %c0_23] : memref<2x200xf32, #tpu.memory_space<vmem>>, vector<2x200xf32>
    tpu.vector_store %arg8[%c0_22, %c0_23], %54 {strides = array<i32>} : memref<2x200xf32, #tpu.memory_space<vmem>>, vector<2x200xf32>,
    return
  }
  func.func @transform_0(%arg0: i32) -> (i32, i32) {
    %c0_i32 = arith.constant 0 : i32
    %c0_i32_0 = arith.constant 0 : i32
    return %arg0, %c0_i32 : i32, i32
  }
  func.func @transform_1(%arg0: i32) -> (i32, i32) {
    %c0_i32 = arith.constant 0 : i32
    %c0_i32_0 = arith.constant 0 : i32
    %c0_i32_1 = arith.constant 0 : i32
    return %c0_i32, %c0_i32_0 : i32, i32
  }
  func.func @transform_2(%arg0: i32) -> (i32, i32) {
    %c0_i32 = arith.constant 0 : i32
    %c0_i32_0 = arith.constant 0 : i32
    %c0_i32_1 = arith.constant 0 : i32
    return %c0_i32, %c0_i32_0 : i32, i32
  }
  func.func @transform_3(%arg0: i32) -> (i32, i32) {
    %c0_i32 = arith.constant 0 : i32
    %c0_i32_0 = arith.constant 0 : i32
    %c0_i32_1 = arith.constant 0 : i32
    return %c0_i32, %c0_i32_0 : i32, i32
  }
  func.func @transform_4(%arg0: i32) -> (i32, i32) {
    %c0_i32 = arith.constant 0 : i32
    %c0_i32_0 = arith.constant 0 : i32
    %c0_i32_1 = arith.constant 0 : i32
    return %c0_i32, %c0_i32_0 : i32, i32
  }
  func.func @transform_5(%arg0: i32) -> (i32, i32) {
    %c0_i32 = arith.constant 0 : i32
    %c0_i32_0 = arith.constant 0 : i32
    %c0_i32_1 = arith.constant 0 : i32
    return %c0_i32, %c0_i32_0 : i32, i32
  }
  func.func @transform_6(%arg0: i32) -> (i32, i32) {
    %c0_i32 = arith.constant 0 : i32
    %c0_i32_0 = arith.constant 0 : i32
    %c0_i32_1 = arith.constant 0 : i32
    return %c0_i32, %c0_i32_0 : i32, i32
  }
  func.func @transform_7(%arg0: i32) -> (i32, i32) {
    %c0_i32 = arith.constant 0 : i32
    %c0_i32_0 = arith.constant 0 : i32
    return %c0_i32, %arg0 : i32, i32
  }
}

</mosaic_0001>

<llo_original>
// kernel: tpu_custom_call.1
$region0: #{tpu_custom_call.1}
  #allocation0 [shape = 'u32[]', space=smem, size = 0x4, offset = 0x4, fixed_abs, tag = 'smem constant byte address 0x4 - core index']
  #allocation1 [shape = 'u32[72,128]{1,0:T(1,128)}', space=vmem, size = 0x9000, scoped, tag = 'internal scratch']
  %s0 = inlined_call_operand.vmem [shape: f32[200,4], index: 0, kind: input, shape index: {}]
  %s1 = inlined_call_operand.vmem [shape: f32[1,128], index: 1, kind: input, shape index: {}]
  %s2 = inlined_call_operand.vmem [shape: f32[4,128], index: 2, kind: input, shape index: {}]
  %s3 = inlined_call_operand.vmem [shape: f32[128,128], index: 3, kind: input, shape index: {}]
  %s4 = inlined_call_operand.vmem [shape: f32[1,128], index: 4, kind: input, shape index: {}]
  %s5 = inlined_call_operand.vmem [shape: f32[2,128], index: 5, kind: input, shape index: {}]
  %s6 = inlined_call_operand.vmem [shape: f32[2,1], index: 6, kind: input, shape index: {}]
  %s7 = inlined_call_operand.hbm [shape: f32[2,200], index: 7, kind: output, shape index: {}]
  %s8 = sld [smem:[#allocation0]]
  $region38: #{tpu_custom_call.1} parent=0
    _
  %s10 = ssub.s32 1, %s8
  %s11 = scalar_select 0, %s10, %s8
  $region1: #{tpu_custom_call.1} parent=0
    #allocation2 [shape = 'u8[2048]{0}', space=vmem, size = 0x800, scoped, tag = 'output window, operand 0, single buffered']
    #allocation3 [shape = 's32[1]{0}', space=sflag, size = 0x4, scoped, tag = 'scoped memory for tpu_custom_call.1']
    %12 = vsyncpa [#allocation3], 0
    // Predicated region
    $region2: #{tpu_custom_call.1} parent=1 // pred_check
      _
    $region3: #{tpu_custom_call.1} parent=1 // pred_check_branch
      %14 = sbr.rel (0) target = $region5
    $region4: #{tpu_custom_call.1} parent=1 // pred_region
      _
    $region5: #{tpu_custom_call.1} parent=1 // pred_fallthru
      _
    // Predicated region
    $region6: #{tpu_custom_call.1} parent=1 // pred_check
      _
    $region7: #{tpu_custom_call.1} parent=1 // pred_check_branch
      %16 = sbr.rel (0) target = $region9
    $region8: #{tpu_custom_call.1} parent=1 // pred_region
      _
    $region9: #{tpu_custom_call.1} parent=1 // pred_fallthru
      _
    // Predicated region
    $region10: #{tpu_custom_call.1} parent=1 // pred_check
      _
    $region11: #{tpu_custom_call.1} parent=1 // pred_check_branch
      %18 = sbr.rel (0) target = $region13
    $region12: #{tpu_custom_call.1} parent=1 // pred_region
      _
    $region13: #{tpu_custom_call.1} parent=1 // pred_fallthru
      _
    // Predicated region
    $region14: #{tpu_custom_call.1} parent=1 // pred_check
      _
    $region15: #{tpu_custom_call.1} parent=1 // pred_check_branch
      %20 = sbr.rel (0) target = $region17
    $region16: #{tpu_custom_call.1} parent=1 // pred_region
      _
    $region17: #{tpu_custom_call.1} parent=1 // pred_fallthru
      _
    // Predicated region
    $region18: #{tpu_custom_call.1} parent=1 // pred_check
      _
    $region19: #{tpu_custom_call.1} parent=1 // pred_check_branch
      %22 = sbr.rel (0) target = $region21
    $region20: #{tpu_custom_call.1} parent=1 // pred_region
      _
    $region21: #{tpu_custom_call.1} parent=1 // pred_fallthru
      _
    // Predicated region
    $region22: #{tpu_custom_call.1} parent=1 // pred_check
      _
    $region23: #{tpu_custom_call.1} parent=1 // pred_check_branch
      %24 = sbr.rel (0) target = $region25
    $region24: #{tpu_custom_call.1} parent=1 // pred_region
      _
    $region25: #{tpu_custom_call.1} parent=1 // pred_fallthru
      _
    // Predicated region
    $region26: #{tpu_custom_call.1} parent=1 // pred_check
      _
    $region27: #{tpu_custom_call.1} parent=1 // pred_check_branch
      %26 = sbr.rel (0) target = $region29
    $region28: #{tpu_custom_call.1} parent=1 // pred_region
      _
    $region29: #{tpu_custom_call.1} parent=1 // pred_fallthru
      _
    %v27 = vld [vmem:[%s0] sm:$0xff]
    %v28 = vld [vmem:[%s0 + $0x8] sm:$0xff]
    %v29 = vld [vmem:[%s0 + $0x10] sm:$0xff]
    %v30 = vld [vmem:[%s0 + $0x18] sm:$0xff]
    %v31 = vld [vmem:[%s0 + $0x20] sm:$0xff]
    %v32 = vld [vmem:[%s0 + $0x28] sm:$0xff]
    %v33 = vld [vmem:[%s0 + $0x30] sm:$0xff]
    %v34 = vld [vmem:[%s0 + $0x38] sm:$0xff]
    %v35 = vld [vmem:[%s0 + $0x40] sm:$0xff]
    %v36 = vld [vmem:[%s0 + $0x48] sm:$0xff]
    %v37 = vld [vmem:[%s0 + $0x50] sm:$0xff]
    %v38 = vld [vmem:[%s0 + $0x58] sm:$0xff]
    %v39 = vld [vmem:[%s0 + $0x60] sm:$0xff]
    %v40 = vld [vmem:[%s0 + $0x68] sm:$0xff]
    %v41 = vld [vmem:[%s0 + $0x70] sm:$0xff]
    %v42 = vld [vmem:[%s0 + $0x78] sm:$0xff]
    %v43 = vld [vmem:[%s0 + $0x80] sm:$0xff]
    %v44 = vld [vmem:[%s0 + $0x88] sm:$0xff]
    %v45 = vld [vmem:[%s0 + $0x90] sm:$0xff]
    %v46 = vld [vmem:[%s0 + $0x98] sm:$0xff]
    %v47 = vld [vmem:[%s0 + $0xa0] sm:$0xff]
    %v48 = vld [vmem:[%s0 + $0xa8] sm:$0xff]
    %v49 = vld [vmem:[%s0 + $0xb0] sm:$0xff]
    %v50 = vld [vmem:[%s0 + $0xb8] sm:$0xff]
    %v51 = vld [vmem:[%s0 + $0xc0] sm:$0xff]
    %v52 = vld [vmem:[%s2] sm:$0x1]
    %54 = vset.pattern.permute.xlu0 0
    %55 = vperm.xlu0 %54, %v27
    %v56 = vpop.permute.xlu0 %55
    %59 = vset.pattern.permute.xlu0 0
    %60 = vperm.xlu0 %59, %v28
    %v61 = vpop.permute.xlu0 %60
    %64 = vset.pattern.permute.xlu0 0
    %65 = vperm.xlu0 %64, %v29
    %v66 = vpop.permute.xlu0 %65
    %69 = vset.pattern.permute.xlu0 0
    %70 = vperm.xlu0 %69, %v30
    %v71 = vpop.permute.xlu0 %70
    %74 = vset.pattern.permute.xlu0 0
    %75 = vperm.xlu0 %74, %v31
    %v76 = vpop.permute.xlu0 %75
    %79 = vset.pattern.permute.xlu0 0
    %80 = vperm.xlu0 %79, %v32
    %v81 = vpop.permute.xlu0 %80
    %84 = vset.pattern.permute.xlu0 0
    %85 = vperm.xlu0 %84, %v33
    %v86 = vpop.permute.xlu0 %85
    %89 = vset.pattern.permute.xlu0 0
    %90 = vperm.xlu0 %89, %v34
    %v91 = vpop.permute.xlu0 %90
    %94 = vset.pattern.permute.xlu0 0
    %95 = vperm.xlu0 %94, %v35
    %v96 = vpop.permute.xlu0 %95
    %99 = vset.pattern.permute.xlu0 0
    %100 = vperm.xlu0 %99, %v36
    %v101 = vpop.permute.xlu0 %100
    %104 = vset.pattern.permute.xlu0 0
    %105 = vperm.xlu0 %104, %v37
    %v106 = vpop.permute.xlu0 %105
    %109 = vset.pattern.permute.xlu0 0
    %110 = vperm.xlu0 %109, %v38
    %v111 = vpop.permute.xlu0 %110
    %114 = vset.pattern.permute.xlu0 0
    %115 = vperm.xlu0 %114, %v39
    %v116 = vpop.permute.xlu0 %115
    %119 = vset.pattern.permute.xlu0 0
    %120 = vperm.xlu0 %119, %v40
    %v121 = vpop.permute.xlu0 %120
    %124 = vset.pattern.permute.xlu0 0
    %125 = vperm.xlu0 %124, %v41
    %v126 = vpop.permute.xlu0 %125
    %129 = vset.pattern.permute.xlu0 0
    %130 = vperm.xlu0 %129, %v42
    %v131 = vpop.permute.xlu0 %130
    %134 = vset.pattern.permute.xlu0 0
    %135 = vperm.xlu0 %134, %v43
    %v136 = vpop.permute.xlu0 %135
    %139 = vset.pattern.permute.xlu0 0
    %140 = vperm.xlu0 %139, %v44
    %v141 = vpop.permute.xlu0 %140
    %144 = vset.pattern.permute.xlu0 0
    %145 = vperm.xlu0 %144, %v45
    %v146 = vpop.permute.xlu0 %145
    %149 = vset.pattern.permute.xlu0 0
    %150 = vperm.xlu0 %149, %v46
    %v151 = vpop.permute.xlu0 %150
    %154 = vset.pattern.permute.xlu0 0
    %155 = vperm.xlu0 %154, %v47
    %v156 = vpop.permute.xlu0 %155
    %159 = vset.pattern.permute.xlu0 0
    %160 = vperm.xlu0 %159, %v48
    %v161 = vpop.permute.xlu0 %160
    %164 = vset.pattern.permute.xlu0 0
    %165 = vperm.xlu0 %164, %v49
    %v166 = vpop.permute.xlu0 %165
    %169 = vset.pattern.permute.xlu0 0
    %170 = vperm.xlu0 %169, %v50
    %v171 = vpop.permute.xlu0 %170
    %174 = vset.pattern.permute.xlu0 0
    %175 = vperm.xlu0 %174, %v51
    %v176 = vpop.permute.xlu0 %175
    %v178 = vperm.slane %v52, 0
    %v179 = vmul.f32 %v56, %v178
    %v180 = vmul.f32 %v61, %v178
    %v181 = vmul.f32 %v66, %v178
    %v182 = vmul.f32 %v71, %v178
    %v183 = vmul.f32 %v76, %v178
    %v184 = vmul.f32 %v81, %v178
    %v185 = vmul.f32 %v86, %v178
    %v186 = vmul.f32 %v91, %v178
    %v187 = vmul.f32 %v96, %v178
    %v188 = vmul.f32 %v101, %v178
    %v189 = vmul.f32 %v106, %v178
    %v190 = vmul.f32 %v111, %v178
    %v191 = vmul.f32 %v116, %v178
    %v192 = vmul.f32 %v121, %v178
    %v193 = vmul.f32 %v126, %v178
    %v194 = vmul.f32 %v131, %v178
    %v195 = vmul.f32 %v136, %v178
    %v196 = vmul.f32 %v141, %v178
    %v197 = vmul.f32 %v146, %v178
    %v198 = vmul.f32 %v151, %v178
    %v199 = vmul.f32 %v156, %v178
    %v200 = vmul.f32 %v161, %v178
    %v201 = vmul.f32 %v166, %v178
    %v202 = vmul.f32 %v171, %v178
    %v203 = vmul.f32 %v176, %v178
    %v204 = vld [vmem:[%s2 + $0x1] sm:$0x1]
    %205 = vset.pattern.permute.xlu0 1
    %206 = vperm.xlu0 %205, %v27
    %v207 = vpop.permute.xlu0 %206
    %209 = vset.pattern.permute.xlu0 1
    %210 = vperm.xlu0 %209, %v28
    %v211 = vpop.permute.xlu0 %210
    %213 = vset.pattern.permute.xlu0 1
    %214 = vperm.xlu0 %213, %v29
    %v215 = vpop.permute.xlu0 %214
    %217 = vset.pattern.permute.xlu0 1
    %218 = vperm.xlu0 %217, %v30
    %v219 = vpop.permute.xlu0 %218
    %221 = vset.pattern.permute.xlu0 1
    %222 = vperm.xlu0 %221, %v31
    %v223 = vpop.permute.xlu0 %222
    %225 = vset.pattern.permute.xlu0 1
    %226 = vperm.xlu0 %225, %v32
    %v227 = vpop.permute.xlu0 %226
    %229 = vset.pattern.permute.xlu0 1
    %230 = vperm.xlu0 %229, %v33
    %v231 = vpop.permute.xlu0 %230
    %233 = vset.pattern.permute.xlu0 1
    %234 = vperm.xlu0 %233, %v34
    %v235 = vpop.permute.xlu0 %234
    %237 = vset.pattern.permute.xlu0 1
    %238 = vperm.xlu0 %237, %v35
    %v239 = vpop.permute.xlu0 %238
    %241 = vset.pattern.permute.xlu0 1
    %242 = vperm.xlu0 %241, %v36
    %v243 = vpop.permute.xlu0 %242
    %245 = vset.pattern.permute.xlu0 1
    %246 = vperm.xlu0 %245, %v37
    %v247 = vpop.permute.xlu0 %246
    %249 = vset.pattern.permute.xlu0 1
    %250 = vperm.xlu0 %249, %v38
    %v251 = vpop.permute.xlu0 %250
    %253 = vset.pattern.permute.xlu0 1
    %254 = vperm.xlu0 %253, %v39
    %v255 = vpop.permute.xlu0 %254
    %257 = vset.pattern.permute.xlu0 1
    %258 = vperm.xlu0 %257, %v40
    %v259 = vpop.permute.xlu0 %258
    %261 = vset.pattern.permute.xlu0 1
    %262 = vperm.xlu0 %261, %v41
    %v263 = vpop.permute.xlu0 %262
    %265 = vset.pattern.permute.xlu0 1
    %266 = vperm.xlu0 %265, %v42
    %v267 = vpop.permute.xlu0 %266
    %269 = vset.pattern.permute.xlu0 1
    %270 = vperm.xlu0 %269, %v43
    %v271 = vpop.permute.xlu0 %270
    %273 = vset.pattern.permute.xlu0 1
    %274 = vperm.xlu0 %273, %v44
    %v275 = vpop.permute.xlu0 %274
    %277 = vset.pattern.permute.xlu0 1
    %278 = vperm.xlu0 %277, %v45
    %v279 = vpop.permute.xlu0 %278
    %281 = vset.pattern.permute.xlu0 1
    %282 = vperm.xlu0 %281, %v46
    %v283 = vpop.permute.xlu0 %282
    %285 = vset.pattern.permute.xlu0 1
    %286 = vperm.xlu0 %285, %v47
    %v287 = vpop.permute.xlu0 %286
    %289 = vset.pattern.permute.xlu0 1
    %290 = vperm.xlu0 %289, %v48
    %v291 = vpop.permute.xlu0 %290
    %293 = vset.pattern.permute.xlu0 1
    %294 = vperm.xlu0 %293, %v49
    %v295 = vpop.permute.xlu0 %294
    %297 = vset.pattern.permute.xlu0 1
    %298 = vperm.xlu0 %297, %v50
    %v299 = vpop.permute.xlu0 %298
    %301 = vset.pattern.permute.xlu0 1
    %302 = vperm.xlu0 %301, %v51
    %v303 = vpop.permute.xlu0 %302
    %v305 = vperm.slane %v204, 0
    %v306 = vmul.f32 %v207, %v305
    %v307 = vmul.f32 %v211, %v305
    %v308 = vmul.f32 %v215, %v305
    %v309 = vmul.f32 %v219, %v305
    %v310 = vmul.f32 %v223, %v305
    %v311 = vmul.f32 %v227, %v305
    %v312 = vmul.f32 %v231, %v305
    %v313 = vmul.f32 %v235, %v305
    %v314 = vmul.f32 %v239, %v305
    %v315 = vmul.f32 %v243, %v305
    %v316 = vmul.f32 %v247, %v305
    %v317 = vmul.f32 %v251, %v305
    %v318 = vmul.f32 %v255, %v305
    %v319 = vmul.f32 %v259, %v305
    %v320 = vmul.f32 %v263, %v305
    %v321 = vmul.f32 %v267, %v305
    %v322 = vmul.f32 %v271, %v305
    %v323 = vmul.f32 %v275, %v305
    %v324 = vmul.f32 %v279, %v305
    %v325 = vmul.f32 %v283, %v305
    %v326 = vmul.f32 %v287, %v305
    %v327 = vmul.f32 %v291, %v305
    %v328 = vmul.f32 %v295, %v305
    %v329 = vmul.f32 %v299, %v305
    %v330 = vmul.f32 %v303, %v305
    %v331 = vadd.f32 %v179, %v306
    %v332 = vadd.f32 %v180, %v307
    %v333 = vadd.f32 %v181, %v308
    %v334 = vadd.f32 %v182, %v309
    %v335 = vadd.f32 %v183, %v310
    %v336 = vadd.f32 %v184, %v311
    %v337 = vadd.f32 %v185, %v312
    %v338 = vadd.f32 %v186, %v313
    %v339 = vadd.f32 %v187, %v314
    %v340 = vadd.f32 %v188, %v315
    %v341 = vadd.f32 %v189, %v316
    %v342 = vadd.f32 %v190, %v317
    %v343 = vadd.f32 %v191, %v318
    %v344 = vadd.f32 %v192, %v319
    %v345 = vadd.f32 %v193, %v320
    %v346 = vadd.f32 %v194, %v321
    %v347 = vadd.f32 %v195, %v322
    %v348 = vadd.f32 %v196, %v323
    %v349 = vadd.f32 %v197, %v324
    %v350 = vadd.f32 %v198, %v325
    %v351 = vadd.f32 %v199, %v326
    %v352 = vadd.f32 %v200, %v327
    %v353 = vadd.f32 %v201, %v328
    %v354 = vadd.f32 %v202, %v329
    %v355 = vadd.f32 %v203, %v330
    %v356 = vld [vmem:[%s2 + $0x2] sm:$0x1]
    %357 = vset.pattern.permute.xlu0 2
    %358 = vperm.xlu0 %357, %v27
    %v359 = vpop.permute.xlu0 %358
    %361 = vset.pattern.permute.xlu0 2
    %362 = vperm.xlu0 %361, %v28
    %v363 = vpop.permute.xlu0 %362
    %365 = vset.pattern.permute.xlu0 2
    %366 = vperm.xlu0 %365, %v29
    %v367 = vpop.permute.xlu0 %366
    %369 = vset.pattern.permute.xlu0 2
    %370 = vperm.xlu0 %369, %v30
    %v371 = vpop.permute.xlu0 %370
    %373 = vset.pattern.permute.xlu0 2
    %374 = vperm.xlu0 %373, %v31
    %v375 = vpop.permute.xlu0 %374
    %377 = vset.pattern.permute.xlu0 2
    %378 = vperm.xlu0 %377, %v32
    %v379 = vpop.permute.xlu0 %378
    %381 = vset.pattern.permute.xlu0 2
    %382 = vperm.xlu0 %381, %v33
    %v383 = vpop.permute.xlu0 %382
    %385 = vset.pattern.permute.xlu0 2
    %386 = vperm.xlu0 %385, %v34
    %v387 = vpop.permute.xlu0 %386
    %389 = vset.pattern.permute.xlu0 2
    %390 = vperm.xlu0 %389, %v35
    %v391 = vpop.permute.xlu0 %390
    %393 = vset.pattern.permute.xlu0 2
    %394 = vperm.xlu0 %393, %v36
    %v395 = vpop.permute.xlu0 %394
    %397 = vset.pattern.permute.xlu0 2
    %398 = vperm.xlu0 %397, %v37
    %v399 = vpop.permute.xlu0 %398
    %401 = vset.pattern.permute.xlu0 2
    %402 = vperm.xlu0 %401, %v38
    %v403 = vpop.permute.xlu0 %402
    %405 = vset.pattern.permute.xlu0 2
    %406 = vperm.xlu0 %405, %v39
    %v407 = vpop.permute.xlu0 %406
    %409 = vset.pattern.permute.xlu0 2
    %410 = vperm.xlu0 %409, %v40
    %v411 = vpop.permute.xlu0 %410
    %413 = vset.pattern.permute.xlu0 2
    %414 = vperm.xlu0 %413, %v41
    %v415 = vpop.permute.xlu0 %414
    %417 = vset.pattern.permute.xlu0 2
    %418 = vperm.xlu0 %417, %v42
    %v419 = vpop.permute.xlu0 %418
    %421 = vset.pattern.permute.xlu0 2
    %422 = vperm.xlu0 %421, %v43
    %v423 = vpop.permute.xlu0 %422
    %425 = vset.pattern.permute.xlu0 2
    %426 = vperm.xlu0 %425, %v44
    %v427 = vpop.permute.xlu0 %426
    %429 = vset.pattern.permute.xlu0 2
    %430 = vperm.xlu0 %429, %v45
    %v431 = vpop.permute.xlu0 %430
    %433 = vset.pattern.permute.xlu0 2
    %434 = vperm.xlu0 %433, %v46
    %v435 = vpop.permute.xlu0 %434
    %437 = vset.pattern.permute.xlu0 2
    %438 = vperm.xlu0 %437, %v47
    %v439 = vpop.permute.xlu0 %438
    %441 = vset.pattern.permute.xlu0 2
    %442 = vperm.xlu0 %441, %v48
    %v443 = vpop.permute.xlu0 %442
    %445 = vset.pattern.permute.xlu0 2
    %446 = vperm.xlu0 %445, %v49
    %v447 = vpop.permute.xlu0 %446
    %449 = vset.pattern.permute.xlu0 2
    %450 = vperm.xlu0 %449, %v50
    %v451 = vpop.permute.xlu0 %450
    %453 = vset.pattern.permute.xlu0 2
    %454 = vperm.xlu0 %453, %v51
    %v455 = vpop.permute.xlu0 %454
    %v457 = vperm.slane %v356, 0
    %v458 = vmul.f32 %v359, %v457
    %v459 = vmul.f32 %v363, %v457
    %v460 = vmul.f32 %v367, %v457
    %v461 = vmul.f32 %v371, %v457
    %v462 = vmul.f32 %v375, %v457
    %v463 = vmul.f32 %v379, %v457
    %v464 = vmul.f32 %v383, %v457
    %v465 = vmul.f32 %v387, %v457
    %v466 = vmul.f32 %v391, %v457
    %v467 = vmul.f32 %v395, %v457
    %v468 = vmul.f32 %v399, %v457
    %v469 = vmul.f32 %v403, %v457
    %v470 = vmul.f32 %v407, %v457
    %v471 = vmul.f32 %v411, %v457
    %v472 = vmul.f32 %v415, %v457
    %v473 = vmul.f32 %v419, %v457
    %v474 = vmul.f32 %v423, %v457
    %v475 = vmul.f32 %v427, %v457
    %v476 = vmul.f32 %v431, %v457
    %v477 = vmul.f32 %v435, %v457
    %v478 = vmul.f32 %v439, %v457
    %v479 = vmul.f32 %v443, %v457
    %v480 = vmul.f32 %v447, %v457
    %v481 = vmul.f32 %v451, %v457
    %v482 = vmul.f32 %v455, %v457
    %v483 = vadd.f32 %v331, %v458
    %v484 = vadd.f32 %v332, %v459
    %v485 = vadd.f32 %v333, %v460
    %v486 = vadd.f32 %v334, %v461
    %v487 = vadd.f32 %v335, %v462
    %v488 = vadd.f32 %v336, %v463
    %v489 = vadd.f32 %v337, %v464
    %v490 = vadd.f32 %v338, %v465
    %v491 = vadd.f32 %v339, %v466
    %v492 = vadd.f32 %v340, %v467
    %v493 = vadd.f32 %v341, %v468
    %v494 = vadd.f32 %v342, %v469
    %v495 = vadd.f32 %v343, %v470
    %v496 = vadd.f32 %v344, %v471
    %v497 = vadd.f32 %v345, %v472
    %v498 = vadd.f32 %v346, %v473
    %v499 = vadd.f32 %v347, %v474
    %v500 = vadd.f32 %v348, %v475
    %v501 = vadd.f32 %v349, %v476
    %v502 = vadd.f32 %v350, %v477
    %v503 = vadd.f32 %v351, %v478
    %v504 = vadd.f32 %v352, %v479
    %v505 = vadd.f32 %v353, %v480
    %v506 = vadd.f32 %v354, %v481
    %v507 = vadd.f32 %v355, %v482
    %v508 = vld [vmem:[%s2 + $0x3] sm:$0x1]
    %509 = vset.pattern.permute.xlu0 3
    %510 = vperm.xlu0 %509, %v27
    %v511 = vpop.permute.xlu0 %510
    %513 = vset.pattern.permute.xlu0 3
    %514 = vperm.xlu0 %513, %v28
    %v515 = vpop.permute.xlu0 %514
    %517 = vset.pattern.permute.xlu0 3
    %518 = vperm.xlu0 %517, %v29
    %v519 = vpop.permute.xlu0 %518
    %521 = vset.pattern.permute.xlu0 3
    %522 = vperm.xlu0 %521, %v30
    %v523 = vpop.permute.xlu0 %522
    %525 = vset.pattern.permute.xlu0 3
    %526 = vperm.xlu0 %525, %v31
    %v527 = vpop.permute.xlu0 %526
    %529 = vset.pattern.permute.xlu0 3
    %530 = vperm.xlu0 %529, %v32
    %v531 = vpop.permute.xlu0 %530
    %533 = vset.pattern.permute.xlu0 3
    %534 = vperm.xlu0 %533, %v33
    %v535 = vpop.permute.xlu0 %534
    %537 = vset.pattern.permute.xlu0 3
    %538 = vperm.xlu0 %537, %v34
    %v539 = vpop.permute.xlu0 %538
    %541 = vset.pattern.permute.xlu0 3
    %542 = vperm.xlu0 %541, %v35
    %v543 = vpop.permute.xlu0 %542
    %545 = vset.pattern.permute.xlu0 3
    %546 = vperm.xlu0 %545, %v36
    %v547 = vpop.permute.xlu0 %546
    %549 = vset.pattern.permute.xlu0 3
    %550 = vperm.xlu0 %549, %v37
    %v551 = vpop.permute.xlu0 %550
    %553 = vset.pattern.permute.xlu0 3
    %554 = vperm.xlu0 %553, %v38
    %v555 = vpop.permute.xlu0 %554
    %557 = vset.pattern.permute.xlu0 3
    %558 = vperm.xlu0 %557, %v39
    %v559 = vpop.permute.xlu0 %558
    %561 = vset.pattern.permute.xlu0 3
    %562 = vperm.xlu0 %561, %v40
    %v563 = vpop.permute.xlu0 %562
    %565 = vset.pattern.permute.xlu0 3
    %566 = vperm.xlu0 %565, %v41
    %v567 = vpop.permute.xlu0 %566
    %569 = vset.pattern.permute.xlu0 3
    %570 = vperm.xlu0 %569, %v42
    %v571 = vpop.permute.xlu0 %570
    %573 = vset.pattern.permute.xlu0 3
    %574 = vperm.xlu0 %573, %v43
    %v575 = vpop.permute.xlu0 %574
    %577 = vset.pattern.permute.xlu0 3
    %578 = vperm.xlu0 %577, %v44
    %v579 = vpop.permute.xlu0 %578
    %581 = vset.pattern.permute.xlu0 3
    %582 = vperm.xlu0 %581, %v45
    %v583 = vpop.permute.xlu0 %582
    %585 = vset.pattern.permute.xlu0 3
    %586 = vperm.xlu0 %585, %v46
    %v587 = vpop.permute.xlu0 %586
    %589 = vset.pattern.permute.xlu0 3
    %590 = vperm.xlu0 %589, %v47
    %v591 = vpop.permute.xlu0 %590
    %593 = vset.pattern.permute.xlu0 3
    %594 = vperm.xlu0 %593, %v48
    %v595 = vpop.permute.xlu0 %594
    %597 = vset.pattern.permute.xlu0 3
    %598 = vperm.xlu0 %597, %v49
    %v599 = vpop.permute.xlu0 %598
    %601 = vset.pattern.permute.xlu0 3
    %602 = vperm.xlu0 %601, %v50
    %v603 = vpop.permute.xlu0 %602
    %605 = vset.pattern.permute.xlu0 3
    %606 = vperm.xlu0 %605, %v51
    %v607 = vpop.permute.xlu0 %606
    %v609 = vperm.slane %v508, 0
    %v610 = vmul.f32 %v511, %v609
    %v611 = vmul.f32 %v515, %v609
    %v612 = vmul.f32 %v519, %v609
    %v613 = vmul.f32 %v523, %v609
    %v614 = vmul.f32 %v527, %v609
    %v615 = vmul.f32 %v531, %v609
    %v616 = vmul.f32 %v535, %v609
    %v617 = vmul.f32 %v539, %v609
    %v618 = vmul.f32 %v543, %v609
    %v619 = vmul.f32 %v547, %v609
    %v620 = vmul.f32 %v551, %v609
    %v621 = vmul.f32 %v555, %v609
    %v622 = vmul.f32 %v559, %v609
    %v623 = vmul.f32 %v563, %v609
    %v624 = vmul.f32 %v567, %v609
    %v625 = vmul.f32 %v571, %v609
    %v626 = vmul.f32 %v575, %v609
    %v627 = vmul.f32 %v579, %v609
    %v628 = vmul.f32 %v583, %v609
    %v629 = vmul.f32 %v587, %v609
    %v630 = vmul.f32 %v591, %v609
    %v631 = vmul.f32 %v595, %v609
    %v632 = vmul.f32 %v599, %v609
    %v633 = vmul.f32 %v603, %v609
    %v634 = vmul.f32 %v607, %v609
    %v635 = vadd.f32 %v483, %v610
    %v636 = vadd.f32 %v484, %v611
    %v637 = vadd.f32 %v485, %v612
    %v638 = vadd.f32 %v486, %v613
    %v639 = vadd.f32 %v487, %v614
    %v640 = vadd.f32 %v488, %v615
    %v641 = vadd.f32 %v489, %v616
    %v642 = vadd.f32 %v490, %v617
    %v643 = vadd.f32 %v491, %v618
    %v644 = vadd.f32 %v492, %v619
    %v645 = vadd.f32 %v493, %v620
    %v646 = vadd.f32 %v494, %v621
    %v647 = vadd.f32 %v495, %v622
    %v648 = vadd.f32 %v496, %v623
    %v649 = vadd.f32 %v497, %v624
    %v650 = vadd.f32 %v498, %v625
    %v651 = vadd.f32 %v499, %v626
    %v652 = vadd.f32 %v500, %v627
    %v653 = vadd.f32 %v501, %v628
    %v654 = vadd.f32 %v502, %v629
    %v655 = vadd.f32 %v503, %v630
    %v656 = vadd.f32 %v504, %v631
    %v657 = vadd.f32 %v505, %v632
    %v658 = vadd.f32 %v506, %v633
    %v659 = vadd.f32 %v507, %v634
    %v660 = vld [vmem:[%s1] sm:$0x1]
    %v662 = vperm.slane %v660, 0
    %v664 = vadd.f32 %v635, %v662
    %v665 = vadd.f32 %v636, %v662
    %v666 = vadd.f32 %v637, %v662
    %v667 = vadd.f32 %v638, %v662
    %v668 = vadd.f32 %v639, %v662
    %v669 = vadd.f32 %v640, %v662
    %v670 = vadd.f32 %v641, %v662
    %v671 = vadd.f32 %v642, %v662
    %v672 = vadd.f32 %v643, %v662
    %v673 = vadd.f32 %v644, %v662
    %v674 = vadd.f32 %v645, %v662
    %v675 = vadd.f32 %v646, %v662
    %v676 = vadd.f32 %v647, %v662
    %v677 = vadd.f32 %v648, %v662
    %v678 = vadd.f32 %v649, %v662
    %v679 = vadd.f32 %v650, %v662
    %v680 = vadd.f32 %v651, %v662
    %v681 = vadd.f32 %v652, %v662
    %v682 = vadd.f32 %v653, %v662
    %v683 = vadd.f32 %v654, %v662
    %v684 = vadd.f32 %v655, %v662
    %v685 = vadd.f32 %v656, %v662
    %v686 = vadd.f32 %v657, %v662
    %v687 = vadd.f32 %v658, %v662
    %v688 = vadd.f32 %v659, %v662
    %v689 = vmax.f32 %v664, 0.0
    %v690 = vmax.f32 %v665, 0.0
    %v691 = vmax.f32 %v666, 0.0
    %v692 = vmax.f32 %v667, 0.0
    %v693 = vmax.f32 %v668, 0.0
    %v694 = vmax.f32 %v669, 0.0
    %v695 = vmax.f32 %v670, 0.0
    %v696 = vmax.f32 %v671, 0.0
    %v697 = vmax.f32 %v672, 0.0
    %v698 = vmax.f32 %v673, 0.0
    %v699 = vmax.f32 %v674, 0.0
    %v700 = vmax.f32 %v675, 0.0
    %v701 = vmax.f32 %v676, 0.0
    %v702 = vmax.f32 %v677, 0.0
    %v703 = vmax.f32 %v678, 0.0
    %v704 = vmax.f32 %v679, 0.0
    %v705 = vmax.f32 %v680, 0.0
    %v706 = vmax.f32 %v681, 0.0
    %v707 = vmax.f32 %v682, 0.0
    %v708 = vmax.f32 %v683, 0.0
    %v709 = vmax.f32 %v684, 0.0
    %v710 = vmax.f32 %v685, 0.0
    %v711 = vmax.f32 %v686, 0.0
    %v712 = vmax.f32 %v687, 0.0
    %v713 = vmax.f32 %v688, 0.0
    %v714 = vld [vmem:[%s3] sm:$0xff]
    %v715 = vld [vmem:[%s3 + $0x8] sm:$0xff]
    %v716 = vld [vmem:[%s3 + $0x10] sm:$0xff]
    %v717 = vld [vmem:[%s3 + $0x18] sm:$0xff]
    %v718 = vld [vmem:[%s3 + $0x20] sm:$0xff]
    %v719 = vld [vmem:[%s3 + $0x28] sm:$0xff]
    %v720 = vld [vmem:[%s3 + $0x30] sm:$0xff]
    %v721 = vld [vmem:[%s3 + $0x38] sm:$0xff]
    %v722 = vld [vmem:[%s3 + $0x40] sm:$0xff]
    %v723 = vld [vmem:[%s3 + $0x48] sm:$0xff]
    %v724 = vld [vmem:[%s3 + $0x50] sm:$0xff]
    %v725 = vld [vmem:[%s3 + $0x58] sm:$0xff]
    %v726 = vld [vmem:[%s3 + $0x60] sm:$0xff]
    %v727 = vld [vmem:[%s3 + $0x68] sm:$0xff]
    %v728 = vld [vmem:[%s3 + $0x70] sm:$0xff]
    %v729 = vld [vmem:[%s3 + $0x78] sm:$0xff]
    %v730 = vld [vmem:[%s4] sm:$0x1]
    %v732 = vperm.slane %v730, 0
    %734 = vmatpush.msra.mxu0 %v729
    %735 = vmatpush.msra.mxu0 %v728
    %736 = vmatpush.msra.mxu0 %v727
    %737 = vmatpush.msra.mxu0 %v726
    %738 = vmatpush.msra.mxu0 %v725
    %739 = vmatpush.msra.mxu0 %v724
    %740 = vmatpush.msra.mxu0 %v723
    %741 = vmatpush.msra.mxu0 %v722
    %742 = vmatpush.msra.mxu0 %v721
    %743 = vmatpush.msra.mxu0 %v720
    %744 = vmatpush.msra.mxu0 %v719
    %745 = vmatpush.msra.mxu0 %v718
    %746 = vmatpush.msra.mxu0 %v717
    %747 = vmatpush.msra.mxu0 %v716
    %748 = vmatpush.msra.mxu0 %v715
    %749 = vmatpush.msra.mxu0 %v714
    %750 = vmatmul.f32.gmra.mxu0 %v689
    %v751 = vpop.f32.mrf.mxu0
    %v752 = vadd.f32 %v732, %v751
    %753 = vmatmul.f32.gmra.mxu0 %v690
    %v754 = vpop.f32.mrf.mxu0
    %v755 = vadd.f32 %v732, %v754
    %756 = vmatmul.f32.gmra.mxu0 %v691
    %v757 = vpop.f32.mrf.mxu0
    %v758 = vadd.f32 %v732, %v757
    %759 = vmatmul.f32.gmra.mxu0 %v692
    %v760 = vpop.f32.mrf.mxu0
    %v761 = vadd.f32 %v732, %v760
    %762 = vmatmul.f32.gmra.mxu0 %v693
    %v763 = vpop.f32.mrf.mxu0
    %v764 = vadd.f32 %v732, %v763
    %765 = vmatmul.f32.gmra.mxu0 %v694
    %v766 = vpop.f32.mrf.mxu0
    %v767 = vadd.f32 %v732, %v766
    %768 = vmatmul.f32.gmra.mxu0 %v695
    %v769 = vpop.f32.mrf.mxu0
    %v770 = vadd.f32 %v732, %v769
    %771 = vmatmul.f32.gmra.mxu0 %v696
    %v772 = vpop.f32.mrf.mxu0
    %v773 = vadd.f32 %v732, %v772
    %774 = vmatmul.f32.gmra.mxu0 %v697
    %v775 = vpop.f32.mrf.mxu0
    %v776 = vadd.f32 %v732, %v775
    %777 = vmatmul.f32.gmra.mxu0 %v698
    %v778 = vpop.f32.mrf.mxu0
    %v779 = vadd.f32 %v732, %v778
    %780 = vmatmul.f32.gmra.mxu0 %v699
    %v781 = vpop.f32.mrf.mxu0
    %v782 = vadd.f32 %v732, %v781
    %783 = vmatmul.f32.gmra.mxu0 %v700
    %v784 = vpop.f32.mrf.mxu0
    %v785 = vadd.f32 %v732, %v784
    %786 = vmatmul.f32.gmra.mxu0 %v701
    %v787 = vpop.f32.mrf.mxu0
    %v788 = vadd.f32 %v732, %v787
    %789 = vmatmul.f32.gmra.mxu0 %v702
    %v790 = vpop.f32.mrf.mxu0
    %v791 = vadd.f32 %v732, %v790
    %792 = vmatmul.f32.gmra.mxu0 %v703
    %v793 = vpop.f32.mrf.mxu0
    %v794 = vadd.f32 %v732, %v793
    %795 = vmatmul.f32.gmra.mxu0 %v704
    %v796 = vpop.f32.mrf.mxu0
    %v797 = vadd.f32 %v732, %v796
    %798 = vmatmul.f32.gmra.mxu0 %v705
    %v799 = vpop.f32.mrf.mxu0
    %v800 = vadd.f32 %v732, %v799
    %801 = vmatmul.f32.gmra.mxu0 %v706
    %v802 = vpop.f32.mrf.mxu0
    %v803 = vadd.f32 %v732, %v802
    %804 = vmatmul.f32.gmra.mxu0 %v707
    %v805 = vpop.f32.mrf.mxu0
    %v806 = vadd.f32 %v732, %v805
    %807 = vmatmul.f32.gmra.mxu0 %v708
    %v808 = vpop.f32.mrf.mxu0
    %v809 = vadd.f32 %v732, %v808
    %810 = vmatmul.f32.gmra.mxu0 %v709
    %v811 = vpop.f32.mrf.mxu0
    %v812 = vadd.f32 %v732, %v811
    %813 = vmatmul.f32.gmra.mxu0 %v710
    %v814 = vpop.f32.mrf.mxu0
    %v815 = vadd.f32 %v732, %v814
    %816 = vmatmul.f32.gmra.mxu0 %v711
    %v817 = vpop.f32.mrf.mxu0
    %v818 = vadd.f32 %v732, %v817
    %819 = vmatmul.f32.gmra.mxu0 %v712
    %v820 = vpop.f32.mrf.mxu0
    %v821 = vadd.f32 %v732, %v820
    %822 = vmatmul.f32.gmra.mxu0 %v713
    %v823 = vpop.f32.mrf.mxu0
    %v824 = vadd.f32 %v732, %v823
    %825 = vdwg.mxu0
    %v826 = vmax.f32 %v752, 0.0
    %v827 = vmax.f32 %v755, 0.0
    %v828 = vmax.f32 %v758, 0.0
    %v829 = vmax.f32 %v761, 0.0
    %v830 = vmax.f32 %v764, 0.0
    %v831 = vmax.f32 %v767, 0.0
    %v832 = vmax.f32 %v770, 0.0
    %v833 = vmax.f32 %v773, 0.0
    %v834 = vmax.f32 %v776, 0.0
    %v835 = vmax.f32 %v779, 0.0
    %v836 = vmax.f32 %v782, 0.0
    %v837 = vmax.f32 %v785, 0.0
    %v838 = vmax.f32 %v788, 0.0
    %v839 = vmax.f32 %v791, 0.0
    %v840 = vmax.f32 %v794, 0.0
    %v841 = vmax.f32 %v797, 0.0
    %v842 = vmax.f32 %v800, 0.0
    %v843 = vmax.f32 %v803, 0.0
    %v844 = vmax.f32 %v806, 0.0
    %v845 = vmax.f32 %v809, 0.0
    %v846 = vmax.f32 %v812, 0.0
    %v847 = vmax.f32 %v815, 0.0
    %v848 = vmax.f32 %v818, 0.0
    %v849 = vmax.f32 %v821, 0.0
    %v850 = vmax.f32 %v824, 0.0
    %v851 = vld [vmem:[%s5] sm:$0x3]
    %v852 = vld [vmem:[%s6] sm:$0x3]
    %854 = vset.pattern.permute.xlu0 0
    %855 = vperm.xlu0 %854, %v852
    %v856 = vpop.permute.xlu0 %855
    %858 = vmatpush.xpose.msra.mxu0 %v841
    %859 = vmatpush.xpose.msra.mxu0 %v840
    %860 = vmatpush.xpose.msra.mxu0 %v839
    %861 = vmatpush.xpose.msra.mxu0 %v838
    %862 = vmatpush.xpose.msra.mxu0 %v837
    %863 = vmatpush.xpose.msra.mxu0 %v836
    %864 = vmatpush.xpose.msra.mxu0 %v835
    %865 = vmatpush.xpose.msra.mxu0 %v834
    %866 = vmatpush.xpose.msra.mxu0 %v833
    %867 = vmatpush.xpose.msra.mxu0 %v832
    %868 = vmatpush.xpose.msra.mxu0 %v831
    %869 = vmatpush.xpose.msra.mxu0 %v830
    %870 = vmatpush.xpose.msra.mxu0 %v829
    %871 = vmatpush.xpose.msra.mxu0 %v828
    %872 = vmatpush.xpose.msra.mxu0 %v827
    %873 = vmatpush.xpose.msra.mxu0 %v826
    %874 = vmatmul.f32.gmra.mxu0 %v851
    %v875 = vpop.f32.mrf.mxu0
    %v876 = vadd.f32 %v856, %v875
    %877 = vdwg.mxu0
    %878 = vmatpush.xpose.msra.mxu0 0.0
    %879 = vmatpush.xpose.msra.mxu0 0.0
    %880 = vmatpush.xpose.msra.mxu0 0.0
    %881 = vmatpush.xpose.msra.mxu0 0.0
    %882 = vmatpush.xpose.msra.mxu0 0.0
    %883 = vmatpush.xpose.msra.mxu0 0.0
    %884 = vmatpush.xpose.msra.mxu0 0.0
    %885 = vmatpush.xpose.msra.mxu0 %v850
    %886 = vmatpush.xpose.msra.mxu0 %v849
    %887 = vmatpush.xpose.msra.mxu0 %v848
    %888 = vmatpush.xpose.msra.mxu0 %v847
    %889 = vmatpush.xpose.msra.mxu0 %v846
    %890 = vmatpush.xpose.msra.mxu0 %v845
    %891 = vmatpush.xpose.msra.mxu0 %v844
    %892 = vmatpush.xpose.msra.mxu0 %v843
    %893 = vmatpush.xpose.msra.mxu0 %v842
    %894 = vmatmul.f32.gmra.mxu0 %v851
    %v895 = vpop.f32.mrf.mxu0
    %v896 = vadd.f32 %v856, %v895
    %897 = vdwg.mxu0
    %v898 = vmax.f32 %v876, 0.0
    %v899 = vmax.f32 %v896, 0.0
    %v900 = vand.u32 2147483647, %v876
    %v901 = vand.u32 2147483647, %v896
    %v902 = vsub.f32 0.0, %v900
    %v903 = vsub.f32 0.0, %v901
    %v904 = vmul.f32 %v902, 1.442695
    %v905 = vpow.pop %v904
    %v906 = vmul.f32 %v903, 1.442695
    %v907 = vpow.pop %v906
    %v908 = vadd.f32 %v905, 1.0
    %v909 = vlog2.pop %v908
    %v910 = vmul.f32 %v909, 0.6931472
    %v911 = vmul.f32 -0.5, %v905
    %v912 = vadd.f32 %v911, 1.0
    %v913 = vmul.f32 %v912, %v905
    %v914 = vand.u32 2147483647, %v905
    %vm915 = vcmp.lt.f32.partialorder %v914, 0.0004427343
    %v916 = vsel %vm915, %v913, %v910
    %v917 = vadd.f32 %v907, 1.0
    %v918 = vlog2.pop %v917
    %v919 = vmul.f32 %v918, 0.6931472
    %v920 = vmul.f32 -0.5, %v907
    %v921 = vadd.f32 %v920, 1.0
    %v922 = vmul.f32 %v921, %v907
    %v923 = vand.u32 2147483647, %v907
    %vm924 = vcmp.lt.f32.partialorder %v923, 0.0004427343
    %v925 = vsel %vm924, %v922, %v919
    %v926 = vadd.f32 %v898, %v916
    %v927 = vadd.f32 %v899, %v925
    %v928 = vlaneseq
    %v929 = vshrl.u32 %v928, 7
    %vm930 = vcmp.lt.s32.totalorder %v929, 1
    %v931 = vadd.f32 %v926, 0.0001
    %v932 = vadd.f32 %v927, 0.0001
    %v933 = vsel %vm930, %v876, %v931
    %v934 = vsel %vm930, %v896, %v932
    %v937 = vrot.slane %v934, 6
    %vm938 = vcmask 1041408
    %v939 = vsel %vm938, %v933, %v937
    %vm941 = vcmask 584706
    %vm942 = vmor %vm941, %vm938
    %943 = vst.msk [vmem:[#allocation2] sm:$0xf] %vm942, %v939
    // Predicated region
    $region30: #{tpu_custom_call.1} parent=1 // pred_check
      _
    $region31: #{tpu_custom_call.1} parent=1 // pred_check_branch
      %945 = sbr.rel (0) target = $region33
    $region32: #{tpu_custom_call.1} parent=1 // pred_region
      %947 = vsyncadd [#allocation3], 0
      %s949 = sshll.u32 [#allocation2], 4
      %s950 = int_to_ptr.vmem [resolvable:$true] %s949
      %s951 = sshll.u32 %s7, 4
      %s952 = int_to_ptr.hbm [resolvable:$true] %s951
      %954 = dma.vmem_to_hbm [thread:$0]  %s950, 64, %s952, [#allocation3]
    $region33: #{tpu_custom_call.1} parent=1 // pred_fallthru
      _
    // Predicated region
    $region34: #{tpu_custom_call.1} parent=1 // pred_check
      _
    $region35: #{tpu_custom_call.1} parent=1 // pred_check_branch
      %956 = sbr.rel (0) target = $region37
    $region36: #{tpu_custom_call.1} parent=1 // pred_region
      %958 = dma.done [#allocation3], 64
    $region37: #{tpu_custom_call.1} parent=1 // pred_fallthru
      _
    %959 = vsyncpa [#allocation3], 1

</llo_original>
